<compile_context>
chip_gen: v5e
topology: v5e:2x2
jax: 0.10.0
libtpu: 0.0.40
codegen_flags: <defaults>
</compile_context>

<pallas_src>
import math

import jax
import jax.numpy as jnp
from jax.experimental import pallas as pl
from jax.experimental.pallas import tpu as pltpu

_TWO_PI = 2.0 * math.pi


def _fourier_features_kernel(x_ref, wt_ref, out_ref):
    """One batch tile per grid step.

    x_ref   : (tm, in_features)    input rows
    wt_ref  : (in_features, half)  2*pi * W.T, VMEM-resident across steps
    out_ref : (tm, 2*half)         [cos(f) | sin(f)]
    """
    half = wt_ref.shape[1]
    # Single MXU contraction; 2*pi is already folded into wt (no VPU scale).
    f = jnp.dot(x_ref[...], wt_ref[...], preferred_element_type=jnp.float32)
    # TODO(synk): share sin/cos range reduction (turns + joint polynomial) if
    # VALU becomes the measured critical slot on v6e/v7x.
    if half % 128 == 0:
        # Two unmasked lane-dense stores; no full-width concat temp in VMEM.
        out_ref[:, :half] = jnp.cos(f).astype(out_ref.dtype)
        out_ref[:, half:] = jnp.sin(f).astype(out_ref.dtype)
    else:
        out = jnp.concatenate([jnp.cos(f), jnp.sin(f)], axis=-1)
        out_ref[...] = out.astype(out_ref.dtype)


def _round_down_8(n):
    return max(8, (n // 8) * 8)


def _step_vmem_bytes(tm, in_features, half, out_features, itemsize):
    """Per-grid-step VMEM estimate.

    Double-buffered input block (last dim lane-padded to >=128) and output
    block, ~3 half-width f32 intermediates (f, cos, sin), plus the resident
    transposed weight.
    """
    x_b = 2 * tm * max(in_features, 128) * itemsize
    o_b = 2 * tm * out_features * itemsize
    mid = 3 * tm * max(half, 128) * 4
    w_b = max(in_features, 8) * max(half, 128) * 4
    return x_b + o_b + mid + w_b


def _choose_tile_m(M, in_features, half, out_features, itemsize):
    target_out_bytes = 2 << 20   # ~2 MiB of output per grid step (amortize ~0.35us/step)
    vmem_budget = 20 << 20       # conservative: fits v7x's 32 MiB scoped / 64 MiB physical

    tm = target_out_bytes // max(1, out_features * itemsize)
    tm = _round_down_8(min(max(int(tm), 8), 8192))
    while tm > 8 and _step_vmem_bytes(tm, in_features, half, out_features,
                                      itemsize) > vmem_budget:
        tm = _round_down_8(tm // 2)

    if M > 512:
        # Ensure >= 2 grid steps so the "parallel" axis shards over both v7x TCs.
        cap = ((M + 1) // 2 + 7) // 8 * 8
        tm = min(tm, max(8, cap))

    if M <= tm:
        tm = M  # single full-extent block; exempt from the (8,128) divisibility rule
    return tm


def fourier_features_forward(x, weight, *, tile_m=None):
    """x: (..., in_features), weight: (half, in_features) -> (..., 2*half)."""
    half, in_features = weight.shape
    assert x.shape[-1] == in_features
    out_features = 2 * half

    lead = x.shape[:-1]
    M = 1
    for d in lead:
        M *= d
    x2d = x.reshape(M, in_features)

    # One-time, parameter-sized transpose with the 2*pi scale folded in.
    wt = jnp.transpose(weight) * _TWO_PI  # (in_features, half)

    itemsize = max(jnp.dtype(x.dtype).itemsize, 4)
    if tile_m is None:
        tm = _choose_tile_m(M, in_features, half, out_features, itemsize)
    else:
        tm = tile_m if tile_m < M else M
        assert tm == M or tm % 8 == 0, "tile_m must be a multiple of 8 (or >= M)"

    grid = (pl.cdiv(M, tm),)
    vmem_limit = int(min(
        64 << 20,
        max(32 << 20,
            2 * _step_vmem_bytes(tm, in_features, half, out_features, itemsize)),
    ))

    out2d = pl.pallas_call(
        _fourier_features_kernel,
        out_shape=jax.ShapeDtypeStruct((M, out_features), x.dtype),
        grid_spec=pltpu.PrefetchScalarGridSpec(
            num_scalar_prefetch=0,
            grid=grid,
            in_specs=[
                pl.BlockSpec((tm, in_features), lambda i: (i, 0)),
                pl.BlockSpec((in_features, half), lambda i: (0, 0)),
            ],
            out_specs=pl.BlockSpec((tm, out_features), lambda i: (i, 0)),
        ),
        compiler_params=pltpu.CompilerParams(
            dimension_semantics=("parallel",),
            vmem_limit_bytes=vmem_limit,
        ),
    )(x2d, wt)

    return out2d.reshape(*lead, out_features)


def _reference(x, weight):
    """Pure-JAX reference of FourierFeatures.forward."""
    f = _TWO_PI * jnp.einsum("...i,oi->...o", x, weight)
    return jnp.concatenate([jnp.cos(f), jnp.sin(f)], axis=-1)


if __name__ == "__main__":
    key = jax.random.PRNGKey(0)
    kx, kw, kx2, kw2 = jax.random.split(key, 4)

    # Test 1: module-sized shapes (batch=2, seq=8, in=4, out=32); single block,
    # lane-misaligned half=16 -> concat store path.
    batch, seq, in_features, out_features = 2, 8, 4, 32
    std = 1.0
    x = jax.random.normal(kx, (batch, seq, in_features), dtype=jnp.float32)
    weight = std * jax.random.normal(
        kw, (out_features // 2, in_features), dtype=jnp.float32
    )
    out = fourier_features_forward(x, weight)
    jax.block_until_ready(out)
    ref = _reference(x, weight)
    assert out.shape == (batch, seq, out_features)
    assert jnp.allclose(out, ref, atol=1e-4, rtol=1e-4)

    # Test 2: exercises the ragged last block (masked final store, no pad/slice)
    # and the lane-aligned two-slice-store path (half = 128).
    in2, out2 = 4, 256
    x2 = jax.random.normal(kx2, (3, 70, in2), dtype=jnp.float32)      # M = 210
    w2 = jax.random.normal(kw2, (out2 // 2, in2), dtype=jnp.float32)  # (128, 4)
    o2 = fourier_features_forward(x2, w2, tile_m=64)                  # grid=(4,), ragged tail
    jax.block_until_ready(o2)
    r2 = _reference(x2, w2)
    assert o2.shape == (3, 70, out2)
    assert jnp.allclose(o2, r2, atol=1e-4, rtol=1e-4)

    print("KERNEL_OK")
</pallas_src>

<mosaic_0001>
module attributes {stable_mosaic.version = 11 : i64} {
  func.func @_fourier_features_kernel(%arg0: i32, %arg1: memref<16x4xf32, #tpu.memory_space<vmem>>, %arg2: memref<4x16xf32, #tpu.memory_space<vmem>>, %arg3: memref<16x32xf32, #tpu.memory_space<vmem>>) attributes {dimension_semantics = [#tpu.dimension_semantics<parallel>], iteration_bounds = array<i64: 1>, scalar_prefetch = 0 : i64, scratch_operands = 0 : i64, tpu.core_type = #tpu.core_type<tc>, window_params = [{transform_indices = @transform_0, window_bounds = array<i64: 16, 4>}, {pipeline_mode = #tpu.pipeline_mode<synchronous>, transform_indices = @transform_1, window_bounds = array<i64: 4, 16>}, {transform_indices = @transform_2, window_bounds = array<i64: 16, 32>}]} {
    %c0 = arith.constant 0 : index
    %c0_0 = arith.constant 0 : index
    %0 = vector.load %arg1[%c0, %c0_0] : memref<16x4xf32, #tpu.memory_space<vmem>>, vector<16x4xf32>
    %c0_1 = arith.constant 0 : index
    %c0_2 = arith.constant 0 : index
    %1 = vector.load %arg2[%c0_1, %c0_2] : memref<4x16xf32, #tpu.memory_space<vmem>>, vector<4x16xf32>
    %cst = arith.constant dense<0.000000e+00> : vector<16x16xf32>
    %2 = tpu.matmul %0, %1, %cst {dimension_numbers = #tpu.dot_dimension_numbers<[1], [0], [0], [1], [0, 0, 1, 1], [], []>} : vector<16x4xf32>, vector<4x16xf32>, vector<16x16xf32> -> vector<16x16xf32>
    %3 = math.cos %2 : vector<16x16xf32>
    %4 = math.sin %2 : vector<16x16xf32>
    %5 = tpu.concatenate %3, %4 in 1 : vector<16x16xf32>, vector<16x16xf32> -> vector<16x32xf32>
    %c0_3 = arith.constant 0 : index
    %c0_4 = arith.constant 0 : index
    %6 = vector.load %arg3[%c0_3, %c0_4] : memref<16x32xf32, #tpu.memory_space<vmem>>, vector<16x32xf32>
    tpu.vector_store %arg3[%c0_3, %c0_4], %5 {strides = array<i32>} : memref<16x32xf32, #tpu.memory_space<vmem>>, vector<16x32xf32>,
    return
  }
  func.func @transform_0(%arg0: i32) -> (i32, i32) {
    %c0_i32 = arith.constant 0 : i32
    %c0_i32_0 = arith.constant 0 : i32
    return %arg0, %c0_i32 : i32, i32
  }
  func.func @transform_1(%arg0: i32) -> (i32, i32) {
    %c0_i32 = arith.constant 0 : i32
    %c0_i32_0 = arith.constant 0 : i32
    %c0_i32_1 = arith.constant 0 : i32
    return %c0_i32, %c0_i32_0 : i32, i32
  }
  func.func @transform_2(%arg0: i32) -> (i32, i32) {
    %c0_i32 = arith.constant 0 : i32
    %c0_i32_0 = arith.constant 0 : i32
    return %arg0, %c0_i32 : i32, i32
  }
}

</mosaic_0001>

<llo_original>
// kernel: tpu_custom_call.1
$region0: #{tpu_custom_call.1}
  #allocation0 [shape = 'u32[]', space=smem, size = 0x4, offset = 0x4, fixed_abs, tag = 'smem constant byte address 0x4 - core index']
  #allocation1 [shape = 'u32[72,128]{1,0:T(1,128)}', space=vmem, size = 0x9000, scoped, tag = 'internal scratch']
  %s0 = inlined_call_operand.vmem [shape: f32[16,4], index: 0, kind: input, shape index: {}]
  %s1 = inlined_call_operand.vmem [shape: f32[4,16], index: 1, kind: input, shape index: {}]
  %s2 = inlined_call_operand.hbm [shape: f32[16,32], index: 2, kind: output, shape index: {}]
  %s3 = sld [smem:[#allocation0]]
  $region18: #{tpu_custom_call.1} parent=0
    _
  %s5 = ssub.s32 1, %s3
  %s6 = scalar_select 0, %s5, %s3
  $region1: #{tpu_custom_call.1} parent=0
    #allocation2 [shape = 'u8[8192]{0}', space=vmem, size = 0x2000, scoped, tag = 'output window, operand 0, single buffered']
    #allocation3 [shape = 's32[1]{0}', space=sflag, size = 0x4, scoped, tag = 'scoped memory for tpu_custom_call.1']
    %7 = vsyncpa [#allocation3], 0
    // Predicated region
    $region2: #{tpu_custom_call.1} parent=1 // pred_check
      _
    $region3: #{tpu_custom_call.1} parent=1 // pred_check_branch
      %9 = sbr.rel (0) target = $region5
    $region4: #{tpu_custom_call.1} parent=1 // pred_region
      _
    $region5: #{tpu_custom_call.1} parent=1 // pred_fallthru
      _
    // Predicated region
    $region6: #{tpu_custom_call.1} parent=1 // pred_check
      _
    $region7: #{tpu_custom_call.1} parent=1 // pred_check_branch
      %11 = sbr.rel (0) target = $region9
    $region8: #{tpu_custom_call.1} parent=1 // pred_region
      _
    $region9: #{tpu_custom_call.1} parent=1 // pred_fallthru
      _
    %v12 = vld [vmem:[%s0] sm:$0xff]
    %v13 = vld [vmem:[%s0 + $0x8] sm:$0xff]
    %v14 = vld [vmem:[%s1] sm:$0xf]
    %vm15 = vcmask 31744
    %v17 = vsel %vm15, %v12, 0
    %v20 = vsel %vm15, %v13, 0
    %vm22 = vcmask 1043456
    %v24 = vsel %vm22, %v14, 0
    %26 = vmatpush.msra.mxu0 0.0
    %27 = vmatpush.msra.mxu0 0.0
    %28 = vmatpush.msra.mxu0 0.0
    %29 = vmatpush.msra.mxu0 0.0
    %30 = vmatpush.msra.mxu0 0.0
    %31 = vmatpush.msra.mxu0 0.0
    %32 = vmatpush.msra.mxu0 0.0
    %33 = vmatpush.msra.mxu0 0.0
    %34 = vmatpush.msra.mxu0 0.0
    %35 = vmatpush.msra.mxu0 0.0
    %36 = vmatpush.msra.mxu0 0.0
    %37 = vmatpush.msra.mxu0 0.0
    %38 = vmatpush.msra.mxu0 0.0
    %39 = vmatpush.msra.mxu0 0.0
    %40 = vmatpush.msra.mxu0 0.0
    %41 = vmatpush.msra.mxu0 %v24
    %42 = vmatmul.f32.gmra.mxu0 %v17
    %v43 = vpop.f32.mrf.mxu0
    %v44 = vadd.f32 0.0, %v43
    %45 = vmatmul.f32.gmra.mxu0 %v20
    %v46 = vpop.f32.mrf.mxu0
    %v47 = vadd.f32 0.0, %v46
    %48 = vdwg.mxu0
    %v49 = vand.u32 2147483647, %v44
    %vm50 = vcmp.le.f32.partialorder %v49, 0.7853982
    %vm51 = vcmp.lt.s32.totalorder %v44, 0
    %v52 = vand.u32 %v44, 2139095040
    %v53 = vshrl.u32 %v52, 23
    %v54 = vsub.s32 %v53, 127
    %v55 = vand.u32 2147483647, %v44
    %v56 = vand.u32 %v55, 8388607
    %v57 = vor.u32 %v56, 8388608
    %v58 = vsub.s32 0, %v57
    %v59 = vadd.s32 %v54, 1
    %vm60 = vcmp.gt.s32.totalorder %v59, 0
    %v61 = vsel %vm60, %v59, 0
    %v62 = vshrl.u32 %v61, 5
    %v63 = vand.u32 %v61, 31
    %v64 = vsub.s32 32, %v63
    %v65 = vshrl.u32 683565275, %v64
    %v66 = vshll.u32 683565275, %v63
    %v67 = vshrl.u32 2475754826, %v64
    %v68 = vor.u32 %v66, %v67
    %v69 = vshll.u32 2475754826, %v63
    %v70 = vshrl.u32 2131351028, %v64
    %v71 = vor.u32 %v69, %v70
    %v72 = vshll.u32 2131351028, %v63
    %v73 = vshrl.u32 2102212464, %v64
    %v74 = vor.u32 %v72, %v73
    %v75 = vshll.u32 2102212464, %v63
    %v76 = vshrl.u32 920167782, %v64
    %v77 = vor.u32 %v75, %v76
    %v78 = vshll.u32 920167782, %v63
    %v79 = vshrl.u32 1326507024, %v64
    %v80 = vor.u32 %v78, %v79
    %vm81 = vcmp.lt.s32.totalorder %v62, 1
    %vm82 = vcmp.lt.s32.totalorder %v62, 2
    %vm83 = vcmp.lt.s32.totalorder %v62, 3
    %vm84 = vcmp.lt.s32.totalorder %v62, 4
    %v85 = vsel %vm81, %v65, %v68
    %v86 = vsel %vm84, %v74, 2102212464
    %v87 = vsel %vm83, %v71, %v86
    %v88 = vsel %vm82, %v85, %v87
    %v89 = vsel %vm81, %v68, %v71
    %v90 = vsel %vm84, %v77, 920167782
    %v91 = vsel %vm83, %v74, %v90
    %v92 = vsel %vm82, %v89, %v91
    %v93 = vsel %vm81, %v71, %v74
    %v94 = vsel %vm84, %v80, 1326507024
    %v95 = vsel %vm83, %v77, %v94
    %v96 = vsel %vm82, %v93, %v95
    %v97 = vshll.u32 %v57, 8
    %v98 = vand.u32 %v97, 65535
    %v99 = vshrl.u32 %v97, 16
    %v100 = vand.u32 %v96, 65535
    %v101 = vshrl.u32 %v96, 16
    %v102 = vmul.u32 %v98, %v100
    %v103 = vmul.u32 %v98, %v101
    %v104 = vmul.u32 %v99, %v100
    %v105 = vmul.u32 %v99, %v101
    %v106 = vshll.u32 %v103, 16
    %v107 = vshrl.u32 %v103, 16
    %v108 = vshll.u32 %v104, 16
    %v109 = vshrl.u32 %v104, 16
    %vm110 = vc.u32 %v102, %v106
    %v111 = vsel %vm110, 1, 0
    %v112 = vadd.s32 %v102, %v106
    %v113 = vadd.s32 %v105, %v111
    %vm114 = vc.u32 %v112, %v108
    %v115 = vsel %vm114, 1, 0
    %v116 = vadd.s32 %v112, %v108
    %v117 = vadd.s32 %v113, %v115
    %v118 = vadd.s32 %v117, %v107
    %v119 = vadd.s32 %v118, %v109
    %v120 = vand.u32 %v97, 65535
    %v121 = vshrl.u32 %v97, 16
    %v122 = vand.u32 %v92, 65535
    %v123 = vshrl.u32 %v92, 16
    %v124 = vmul.u32 %v120, %v122
    %v125 = vmul.u32 %v120, %v123
    %v126 = vmul.u32 %v121, %v122
    %v127 = vmul.u32 %v121, %v123
    %v128 = vshll.u32 %v125, 16
    %v129 = vshrl.u32 %v125, 16
    %v130 = vshll.u32 %v126, 16
    %v131 = vshrl.u32 %v126, 16
    %vm132 = vc.u32 %v124, %v128
    %v133 = vsel %vm132, 1, 0
    %v134 = vadd.s32 %v124, %v128
    %v135 = vadd.s32 %v127, %v133
    %vm136 = vc.u32 %v134, %v130
    %v137 = vsel %vm136, 1, 0
    %v138 = vadd.s32 %v134, %v130
    %v139 = vadd.s32 %v135, %v137
    %v140 = vadd.s32 %v139, %v129
    %v141 = vadd.s32 %v140, %v131
    %v142 = vmul.u32 %v97, %v88
    %v143 = vadd.s32 %v119, %v138
    %vm144 = vc.u32 %v119, %v138
    %v145 = vadd.s32 %v141, 1
    %v146 = vsel %vm144, %v145, %v141
    %v147 = vadd.s32 %v142, %v146
    %v148 = vadd.s32 %v147, 536870912
    %v149 = vshrl.u32 %v148, 30
    %v150 = vshll.u32 %v149, 30
    %v151 = vsub.s32 %v147, %v150
    %vm152 = vcmp.lt.s32.totalorder %v151, 0
    %v153 = vsub.s32 0, %v151
    %v154 = vsel %vm152, %v153, %v151
    %v155 = vclz %v154
    %v156 = vsub.s32 %v155, 2
    %vm157 = vcmp.gt.s32.totalorder 0, %v156
    %v158 = vsel %vm157, 0, %v156
    %v159 = vsub.s32 32, %v158
    %v160 = vshll.u32 %v151, %v158
    %v161 = vshrl.u32 %v143, %v159
    %v162 = vor.u32 %v160, %v161
    %v163 = vsub.s32 4294967266, %v158
    %v164 = vadd.s32 %v163, 127
    %v165 = vshll.u32 %v164, 23
    %v166 = vor.u32 4788187, %v165
    %v167 = vand.u32 2147483647, %v166
    %v169 = vcvt.s32.f32 %v162
    %v170 = vmul.f32 %v169, %v167
    %v171 = vxor.u32 %v170, 2147483648
    %v172 = vsel %vm51, %v171, %v170
    %v173 = vsub.s32 4, %v149
    %v174 = vsel %vm51, %v173, %v149
    %v175 = vsel %vm50, %v44, %v172
    %v176 = vsel %vm50, 0, %v174
    %v177 = vmul.f32 %v175, %v175
    %v178 = vmul.f32 %v177, -0.001358992
    %v179 = vadd.f32 %v178, 0.041655596
    %v180 = vmul.f32 %v177, %v179
    %v181 = vadd.f32 %v180, -0.4999988
    %v182 = vmul.f32 %v177, %v181
    %v183 = vadd.f32 1.0, %v182
    %v184 = vmul.f32 %v175, %v175
    %v185 = vmul.f32 %v184, -0.00019511016
    %v186 = vadd.f32 %v185, 0.008332121
    %v187 = vmul.f32 %v184, %v186
    %v188 = vadd.f32 %v187, -0.16666654
    %v189 = vmul.f32 %v184, %v188
    %v190 = vadd.f32 %v189, 1.0
    %v191 = vmul.f32 %v190, %v175
    %vm192 = vweird.f32 %v44
    %v193 = vand.u32 %v176, 3
    %vm194 = vcmp.lt.s32.totalorder %v193, 2
    %vm195 = vcmp.eq.s32.totalorder %v193, 0
    %v196 = vxor.u32 %v191, 2147483648
    %v197 = vsel %vm195, %v183, %v196
    %vm198 = vcmp.eq.s32.totalorder %v193, 2
    %v199 = vxor.u32 %v183, 2147483648
    %v200 = vsel %vm198, %v199, %v191
    %v201 = vsel %vm194, %v197, %v200
    %v202 = vsel %vm192, nan, %v201
    %v203 = vand.u32 2147483647, %v47
    %vm204 = vcmp.le.f32.partialorder %v203, 0.7853982
    %vm205 = vcmp.lt.s32.totalorder %v47, 0
    %v206 = vand.u32 %v47, 2139095040
    %v207 = vshrl.u32 %v206, 23
    %v208 = vsub.s32 %v207, 127
    %v209 = vand.u32 2147483647, %v47
    %v210 = vand.u32 %v209, 8388607
    %v211 = vor.u32 %v210, 8388608
    %v212 = vsub.s32 0, %v211
    %v213 = vadd.s32 %v208, 1
    %vm214 = vcmp.gt.s32.totalorder %v213, 0
    %v215 = vsel %vm214, %v213, 0
    %v216 = vshrl.u32 %v215, 5
    %v217 = vand.u32 %v215, 31
    %v218 = vsub.s32 32, %v217
    %v219 = vshrl.u32 683565275, %v218
    %v220 = vshll.u32 683565275, %v217
    %v221 = vshrl.u32 2475754826, %v218
    %v222 = vor.u32 %v220, %v221
    %v223 = vshll.u32 2475754826, %v217
    %v224 = vshrl.u32 2131351028, %v218
    %v225 = vor.u32 %v223, %v224
    %v226 = vshll.u32 2131351028, %v217
    %v227 = vshrl.u32 2102212464, %v218
    %v228 = vor.u32 %v226, %v227
    %v229 = vshll.u32 2102212464, %v217
    %v230 = vshrl.u32 920167782, %v218
    %v231 = vor.u32 %v229, %v230
    %v232 = vshll.u32 920167782, %v217
    %v233 = vshrl.u32 1326507024, %v218
    %v234 = vor.u32 %v232, %v233
    %vm235 = vcmp.lt.s32.totalorder %v216, 1
    %vm236 = vcmp.lt.s32.totalorder %v216, 2
    %vm237 = vcmp.lt.s32.totalorder %v216, 3
    %vm238 = vcmp.lt.s32.totalorder %v216, 4
    %v239 = vsel %vm235, %v219, %v222
    %v240 = vsel %vm238, %v228, 2102212464
    %v241 = vsel %vm237, %v225, %v240
    %v242 = vsel %vm236, %v239, %v241
    %v243 = vsel %vm235, %v222, %v225
    %v244 = vsel %vm238, %v231, 920167782
    %v245 = vsel %vm237, %v228, %v244
    %v246 = vsel %vm236, %v243, %v245
    %v247 = vsel %vm235, %v225, %v228
    %v248 = vsel %vm238, %v234, 1326507024
    %v249 = vsel %vm237, %v231, %v248
    %v250 = vsel %vm236, %v247, %v249
    %v251 = vshll.u32 %v211, 8
    %v252 = vand.u32 %v251, 65535
    %v253 = vshrl.u32 %v251, 16
    %v254 = vand.u32 %v250, 65535
    %v255 = vshrl.u32 %v250, 16
    %v256 = vmul.u32 %v252, %v254
    %v257 = vmul.u32 %v252, %v255
    %v258 = vmul.u32 %v253, %v254
    %v259 = vmul.u32 %v253, %v255
    %v260 = vshll.u32 %v257, 16
    %v261 = vshrl.u32 %v257, 16
    %v262 = vshll.u32 %v258, 16
    %v263 = vshrl.u32 %v258, 16
    %vm264 = vc.u32 %v256, %v260
    %v265 = vsel %vm264, 1, 0
    %v266 = vadd.s32 %v256, %v260
    %v267 = vadd.s32 %v259, %v265
    %vm268 = vc.u32 %v266, %v262
    %v269 = vsel %vm268, 1, 0
    %v270 = vadd.s32 %v266, %v262
    %v271 = vadd.s32 %v267, %v269
    %v272 = vadd.s32 %v271, %v261
    %v273 = vadd.s32 %v272, %v263
    %v274 = vand.u32 %v251, 65535
    %v275 = vshrl.u32 %v251, 16
    %v276 = vand.u32 %v246, 65535
    %v277 = vshrl.u32 %v246, 16
    %v278 = vmul.u32 %v274, %v276
    %v279 = vmul.u32 %v274, %v277
    %v280 = vmul.u32 %v275, %v276
    %v281 = vmul.u32 %v275, %v277
    %v282 = vshll.u32 %v279, 16
    %v283 = vshrl.u32 %v279, 16
    %v284 = vshll.u32 %v280, 16
    %v285 = vshrl.u32 %v280, 16
    %vm286 = vc.u32 %v278, %v282
    %v287 = vsel %vm286, 1, 0
    %v288 = vadd.s32 %v278, %v282
    %v289 = vadd.s32 %v281, %v287
    %vm290 = vc.u32 %v288, %v284
    %v291 = vsel %vm290, 1, 0
    %v292 = vadd.s32 %v288, %v284
    %v293 = vadd.s32 %v289, %v291
    %v294 = vadd.s32 %v293, %v283
    %v295 = vadd.s32 %v294, %v285
    %v296 = vmul.u32 %v251, %v242
    %v297 = vadd.s32 %v273, %v292
    %vm298 = vc.u32 %v273, %v292
    %v299 = vadd.s32 %v295, 1
    %v300 = vsel %vm298, %v299, %v295
    %v301 = vadd.s32 %v296, %v300
    %v302 = vadd.s32 %v301, 536870912
    %v303 = vshrl.u32 %v302, 30
    %v304 = vshll.u32 %v303, 30
    %v305 = vsub.s32 %v301, %v304
    %vm306 = vcmp.lt.s32.totalorder %v305, 0
    %v307 = vsub.s32 0, %v305
    %v308 = vsel %vm306, %v307, %v305
    %v309 = vclz %v308
    %v310 = vsub.s32 %v309, 2
    %vm311 = vcmp.gt.s32.totalorder 0, %v310
    %v312 = vsel %vm311, 0, %v310
    %v313 = vsub.s32 32, %v312
    %v314 = vshll.u32 %v305, %v312
    %v315 = vshrl.u32 %v297, %v313
    %v316 = vor.u32 %v314, %v315
    %v317 = vsub.s32 4294967266, %v312
    %v318 = vadd.s32 %v317, 127
    %v319 = vshll.u32 %v318, 23
    %v320 = vor.u32 4788187, %v319
    %v321 = vand.u32 2147483647, %v320
    %v323 = vcvt.s32.f32 %v316
    %v324 = vmul.f32 %v323, %v321
    %v325 = vxor.u32 %v324, 2147483648
    %v326 = vsel %vm205, %v325, %v324
    %v327 = vsub.s32 4, %v303
    %v328 = vsel %vm205, %v327, %v303
    %v329 = vsel %vm204, %v47, %v326
    %v330 = vsel %vm204, 0, %v328
    %v331 = vmul.f32 %v329, %v329
    %v332 = vmul.f32 %v331, -0.001358992
    %v333 = vadd.f32 %v332, 0.041655596
    %v334 = vmul.f32 %v331, %v333
    %v335 = vadd.f32 %v334, -0.4999988
    %v336 = vmul.f32 %v331, %v335
    %v337 = vadd.f32 1.0, %v336
    %v338 = vmul.f32 %v329, %v329
    %v339 = vmul.f32 %v338, -0.00019511016
    %v340 = vadd.f32 %v339, 0.008332121
    %v341 = vmul.f32 %v338, %v340
    %v342 = vadd.f32 %v341, -0.16666654
    %v343 = vmul.f32 %v338, %v342
    %v344 = vadd.f32 %v343, 1.0
    %v345 = vmul.f32 %v344, %v329
    %vm346 = vweird.f32 %v47
    %v347 = vand.u32 %v330, 3
    %vm348 = vcmp.lt.s32.totalorder %v347, 2
    %vm349 = vcmp.eq.s32.totalorder %v347, 0
    %v350 = vxor.u32 %v345, 2147483648
    %v351 = vsel %vm349, %v337, %v350
    %vm352 = vcmp.eq.s32.totalorder %v347, 2
    %v353 = vxor.u32 %v337, 2147483648
    %v354 = vsel %vm352, %v353, %v345
    %v355 = vsel %vm348, %v351, %v354
    %v356 = vsel %vm346, nan, %v355
    %v357 = vand.u32 2147483647, %v44
    %vm358 = vcmp.le.f32.partialorder %v357, 0.7853982
    %vm359 = vcmp.lt.s32.totalorder %v44, 0
    %v360 = vand.u32 %v44, 2139095040
    %v361 = vshrl.u32 %v360, 23
    %v362 = vsub.s32 %v361, 127
    %v363 = vand.u32 2147483647, %v44
    %v364 = vand.u32 %v363, 8388607
    %v365 = vor.u32 %v364, 8388608
    %v366 = vsub.s32 0, %v365
    %v367 = vadd.s32 %v362, 1
    %vm368 = vcmp.gt.s32.totalorder %v367, 0
    %v369 = vsel %vm368, %v367, 0
    %v370 = vshrl.u32 %v369, 5
    %v371 = vand.u32 %v369, 31
    %v372 = vsub.s32 32, %v371
    %v373 = vshrl.u32 683565275, %v372
    %v374 = vshll.u32 683565275, %v371
    %v375 = vshrl.u32 2475754826, %v372
    %v376 = vor.u32 %v374, %v375
    %v377 = vshll.u32 2475754826, %v371
    %v378 = vshrl.u32 2131351028, %v372
    %v379 = vor.u32 %v377, %v378
    %v380 = vshll.u32 2131351028, %v371
    %v381 = vshrl.u32 2102212464, %v372
    %v382 = vor.u32 %v380, %v381
    %v383 = vshll.u32 2102212464, %v371
    %v384 = vshrl.u32 920167782, %v372
    %v385 = vor.u32 %v383, %v384
    %v386 = vshll.u32 920167782, %v371
    %v387 = vshrl.u32 1326507024, %v372
    %v388 = vor.u32 %v386, %v387
    %vm389 = vcmp.lt.s32.totalorder %v370, 1
    %vm390 = vcmp.lt.s32.totalorder %v370, 2
    %vm391 = vcmp.lt.s32.totalorder %v370, 3
    %vm392 = vcmp.lt.s32.totalorder %v370, 4
    %v393 = vsel %vm389, %v373, %v376
    %v394 = vsel %vm392, %v382, 2102212464
    %v395 = vsel %vm391, %v379, %v394
    %v396 = vsel %vm390, %v393, %v395
    %v397 = vsel %vm389, %v376, %v379
    %v398 = vsel %vm392, %v385, 920167782
    %v399 = vsel %vm391, %v382, %v398
    %v400 = vsel %vm390, %v397, %v399
    %v401 = vsel %vm389, %v379, %v382
    %v402 = vsel %vm392, %v388, 1326507024
    %v403 = vsel %vm391, %v385, %v402
    %v404 = vsel %vm390, %v401, %v403
    %v405 = vshll.u32 %v365, 8
    %v406 = vand.u32 %v405, 65535
    %v407 = vshrl.u32 %v405, 16
    %v408 = vand.u32 %v404, 65535
    %v409 = vshrl.u32 %v404, 16
    %v410 = vmul.u32 %v406, %v408
    %v411 = vmul.u32 %v406, %v409
    %v412 = vmul.u32 %v407, %v408
    %v413 = vmul.u32 %v407, %v409
    %v414 = vshll.u32 %v411, 16
    %v415 = vshrl.u32 %v411, 16
    %v416 = vshll.u32 %v412, 16
    %v417 = vshrl.u32 %v412, 16
    %vm418 = vc.u32 %v410, %v414
    %v419 = vsel %vm418, 1, 0
    %v420 = vadd.s32 %v410, %v414
    %v421 = vadd.s32 %v413, %v419
    %vm422 = vc.u32 %v420, %v416
    %v423 = vsel %vm422, 1, 0
    %v424 = vadd.s32 %v420, %v416
    %v425 = vadd.s32 %v421, %v423
    %v426 = vadd.s32 %v425, %v415
    %v427 = vadd.s32 %v426, %v417
    %v428 = vand.u32 %v405, 65535
    %v429 = vshrl.u32 %v405, 16
    %v430 = vand.u32 %v400, 65535
    %v431 = vshrl.u32 %v400, 16
    %v432 = vmul.u32 %v428, %v430
    %v433 = vmul.u32 %v428, %v431
    %v434 = vmul.u32 %v429, %v430
    %v435 = vmul.u32 %v429, %v431
    %v436 = vshll.u32 %v433, 16
    %v437 = vshrl.u32 %v433, 16
    %v438 = vshll.u32 %v434, 16
    %v439 = vshrl.u32 %v434, 16
    %vm440 = vc.u32 %v432, %v436
    %v441 = vsel %vm440, 1, 0
    %v442 = vadd.s32 %v432, %v436
    %v443 = vadd.s32 %v435, %v441
    %vm444 = vc.u32 %v442, %v438
    %v445 = vsel %vm444, 1, 0
    %v446 = vadd.s32 %v442, %v438
    %v447 = vadd.s32 %v443, %v445
    %v448 = vadd.s32 %v447, %v437
    %v449 = vadd.s32 %v448, %v439
    %v450 = vmul.u32 %v405, %v396
    %v451 = vadd.s32 %v427, %v446
    %vm452 = vc.u32 %v427, %v446
    %v453 = vadd.s32 %v449, 1
    %v454 = vsel %vm452, %v453, %v449
    %v455 = vadd.s32 %v450, %v454
    %v456 = vadd.s32 %v455, 536870912
    %v457 = vshrl.u32 %v456, 30
    %v458 = vshll.u32 %v457, 30
    %v459 = vsub.s32 %v455, %v458
    %vm460 = vcmp.lt.s32.totalorder %v459, 0
    %v461 = vsub.s32 0, %v459
    %v462 = vsel %vm460, %v461, %v459
    %v463 = vclz %v462
    %v464 = vsub.s32 %v463, 2
    %vm465 = vcmp.gt.s32.totalorder 0, %v464
    %v466 = vsel %vm465, 0, %v464
    %v467 = vsub.s32 32, %v466
    %v468 = vshll.u32 %v459, %v466
    %v469 = vshrl.u32 %v451, %v467
    %v470 = vor.u32 %v468, %v469
    %v471 = vsub.s32 4294967266, %v466
    %v472 = vadd.s32 %v471, 127
    %v473 = vshll.u32 %v472, 23
    %v474 = vor.u32 4788187, %v473
    %v475 = vand.u32 2147483647, %v474
    %v477 = vcvt.s32.f32 %v470
    %v478 = vmul.f32 %v477, %v475
    %v479 = vxor.u32 %v478, 2147483648
    %v480 = vsel %vm359, %v479, %v478
    %v481 = vsub.s32 4, %v457
    %v482 = vsel %vm359, %v481, %v457
    %v483 = vsel %vm358, %v44, %v480
    %v484 = vsel %vm358, 0, %v482
    %v485 = vmul.f32 %v483, %v483
    %v486 = vmul.f32 %v485, -0.001358992
    %v487 = vadd.f32 %v486, 0.041655596
    %v488 = vmul.f32 %v485, %v487
    %v489 = vadd.f32 %v488, -0.4999988
    %v490 = vmul.f32 %v485, %v489
    %v491 = vadd.f32 1.0, %v490
    %v492 = vmul.f32 %v483, %v483
    %v493 = vmul.f32 %v492, -0.00019511016
    %v494 = vadd.f32 %v493, 0.008332121
    %v495 = vmul.f32 %v492, %v494
    %v496 = vadd.f32 %v495, -0.16666654
    %v497 = vmul.f32 %v492, %v496
    %v498 = vadd.f32 %v497, 1.0
    %v499 = vmul.f32 %v498, %v483
    %vm500 = vweird.f32 %v44
    %v501 = vadd.s32 %v484, 3
    %v502 = vand.u32 %v501, 3
    %vm503 = vcmp.lt.s32.totalorder %v502, 2
    %vm504 = vcmp.eq.s32.totalorder %v502, 0
    %v505 = vxor.u32 %v499, 2147483648
    %v506 = vsel %vm504, %v491, %v505
    %vm507 = vcmp.eq.s32.totalorder %v502, 2
    %v508 = vxor.u32 %v491, 2147483648
    %v509 = vsel %vm507, %v508, %v499
    %v510 = vsel %vm503, %v506, %v509
    %v511 = vsel %vm500, nan, %v510
    %v512 = vand.u32 2147483647, %v47
    %vm513 = vcmp.le.f32.partialorder %v512, 0.7853982
    %vm514 = vcmp.lt.s32.totalorder %v47, 0
    %v515 = vand.u32 %v47, 2139095040
    %v516 = vshrl.u32 %v515, 23
    %v517 = vsub.s32 %v516, 127
    %v518 = vand.u32 2147483647, %v47
    %v519 = vand.u32 %v518, 8388607
    %v520 = vor.u32 %v519, 8388608
    %v521 = vsub.s32 0, %v520
    %v522 = vadd.s32 %v517, 1
    %vm523 = vcmp.gt.s32.totalorder %v522, 0
    %v524 = vsel %vm523, %v522, 0
    %v525 = vshrl.u32 %v524, 5
    %v526 = vand.u32 %v524, 31
    %v527 = vsub.s32 32, %v526
    %v528 = vshrl.u32 683565275, %v527
    %v529 = vshll.u32 683565275, %v526
    %v530 = vshrl.u32 2475754826, %v527
    %v531 = vor.u32 %v529, %v530
    %v532 = vshll.u32 2475754826, %v526
    %v533 = vshrl.u32 2131351028, %v527
    %v534 = vor.u32 %v532, %v533
    %v535 = vshll.u32 2131351028, %v526
    %v536 = vshrl.u32 2102212464, %v527
    %v537 = vor.u32 %v535, %v536
    %v538 = vshll.u32 2102212464, %v526
    %v539 = vshrl.u32 920167782, %v527
    %v540 = vor.u32 %v538, %v539
    %v541 = vshll.u32 920167782, %v526
    %v542 = vshrl.u32 1326507024, %v527
    %v543 = vor.u32 %v541, %v542
    %vm544 = vcmp.lt.s32.totalorder %v525, 1
    %vm545 = vcmp.lt.s32.totalorder %v525, 2
    %vm546 = vcmp.lt.s32.totalorder %v525, 3
    %vm547 = vcmp.lt.s32.totalorder %v525, 4
    %v548 = vsel %vm544, %v528, %v531
    %v549 = vsel %vm547, %v537, 2102212464
    %v550 = vsel %vm546, %v534, %v549
    %v551 = vsel %vm545, %v548, %v550
    %v552 = vsel %vm544, %v531, %v534
    %v553 = vsel %vm547, %v540, 920167782
    %v554 = vsel %vm546, %v537, %v553
    %v555 = vsel %vm545, %v552, %v554
    %v556 = vsel %vm544, %v534, %v537
    %v557 = vsel %vm547, %v543, 1326507024
    %v558 = vsel %vm546, %v540, %v557
    %v559 = vsel %vm545, %v556, %v558
    %v560 = vshll.u32 %v520, 8
    %v561 = vand.u32 %v560, 65535
    %v562 = vshrl.u32 %v560, 16
    %v563 = vand.u32 %v559, 65535
    %v564 = vshrl.u32 %v559, 16
    %v565 = vmul.u32 %v561, %v563
    %v566 = vmul.u32 %v561, %v564
    %v567 = vmul.u32 %v562, %v563
    %v568 = vmul.u32 %v562, %v564
    %v569 = vshll.u32 %v566, 16
    %v570 = vshrl.u32 %v566, 16
    %v571 = vshll.u32 %v567, 16
    %v572 = vshrl.u32 %v567, 16
    %vm573 = vc.u32 %v565, %v569
    %v574 = vsel %vm573, 1, 0
    %v575 = vadd.s32 %v565, %v569
    %v576 = vadd.s32 %v568, %v574
    %vm577 = vc.u32 %v575, %v571
    %v578 = vsel %vm577, 1, 0
    %v579 = vadd.s32 %v575, %v571
    %v580 = vadd.s32 %v576, %v578
    %v581 = vadd.s32 %v580, %v570
    %v582 = vadd.s32 %v581, %v572
    %v583 = vand.u32 %v560, 65535
    %v584 = vshrl.u32 %v560, 16
    %v585 = vand.u32 %v555, 65535
    %v586 = vshrl.u32 %v555, 16
    %v587 = vmul.u32 %v583, %v585
    %v588 = vmul.u32 %v583, %v586
    %v589 = vmul.u32 %v584, %v585
    %v590 = vmul.u32 %v584, %v586
    %v591 = vshll.u32 %v588, 16
    %v592 = vshrl.u32 %v588, 16
    %v593 = vshll.u32 %v589, 16
    %v594 = vshrl.u32 %v589, 16
    %vm595 = vc.u32 %v587, %v591
    %v596 = vsel %vm595, 1, 0
    %v597 = vadd.s32 %v587, %v591
    %v598 = vadd.s32 %v590, %v596
    %vm599 = vc.u32 %v597, %v593
    %v600 = vsel %vm599, 1, 0
    %v601 = vadd.s32 %v597, %v593
    %v602 = vadd.s32 %v598, %v600
    %v603 = vadd.s32 %v602, %v592
    %v604 = vadd.s32 %v603, %v594
    %v605 = vmul.u32 %v560, %v551
    %v606 = vadd.s32 %v582, %v601
    %vm607 = vc.u32 %v582, %v601
    %v608 = vadd.s32 %v604, 1
    %v609 = vsel %vm607, %v608, %v604
    %v610 = vadd.s32 %v605, %v609
    %v611 = vadd.s32 %v610, 536870912
    %v612 = vshrl.u32 %v611, 30
    %v613 = vshll.u32 %v612, 30
    %v614 = vsub.s32 %v610, %v613
    %vm615 = vcmp.lt.s32.totalorder %v614, 0
    %v616 = vsub.s32 0, %v614
    %v617 = vsel %vm615, %v616, %v614
    %v618 = vclz %v617
    %v619 = vsub.s32 %v618, 2
    %vm620 = vcmp.gt.s32.totalorder 0, %v619
    %v621 = vsel %vm620, 0, %v619
    %v622 = vsub.s32 32, %v621
    %v623 = vshll.u32 %v614, %v621
    %v624 = vshrl.u32 %v606, %v622
    %v625 = vor.u32 %v623, %v624
    %v626 = vsub.s32 4294967266, %v621
    %v627 = vadd.s32 %v626, 127
    %v628 = vshll.u32 %v627, 23
    %v629 = vor.u32 4788187, %v628
    %v630 = vand.u32 2147483647, %v629
    %v632 = vcvt.s32.f32 %v625
    %v633 = vmul.f32 %v632, %v630
    %v634 = vxor.u32 %v633, 2147483648
    %v635 = vsel %vm514, %v634, %v633
    %v636 = vsub.s32 4, %v612
    %v637 = vsel %vm514, %v636, %v612
    %v638 = vsel %vm513, %v47, %v635
    %v639 = vsel %vm513, 0, %v637
    %v640 = vmul.f32 %v638, %v638
    %v641 = vmul.f32 %v640, -0.001358992
    %v642 = vadd.f32 %v641, 0.041655596
    %v643 = vmul.f32 %v640, %v642
    %v644 = vadd.f32 %v643, -0.4999988
    %v645 = vmul.f32 %v640, %v644
    %v646 = vadd.f32 1.0, %v645
    %v647 = vmul.f32 %v638, %v638
    %v648 = vmul.f32 %v647, -0.00019511016
    %v649 = vadd.f32 %v648, 0.008332121
    %v650 = vmul.f32 %v647, %v649
    %v651 = vadd.f32 %v650, -0.16666654
    %v652 = vmul.f32 %v647, %v651
    %v653 = vadd.f32 %v652, 1.0
    %v654 = vmul.f32 %v653, %v638
    %vm655 = vweird.f32 %v47
    %v656 = vadd.s32 %v639, 3
    %v657 = vand.u32 %v656, 3
    %vm658 = vcmp.lt.s32.totalorder %v657, 2
    %vm659 = vcmp.eq.s32.totalorder %v657, 0
    %v660 = vxor.u32 %v654, 2147483648
    %v661 = vsel %vm659, %v646, %v660
    %vm662 = vcmp.eq.s32.totalorder %v657, 2
    %v663 = vxor.u32 %v646, 2147483648
    %v664 = vsel %vm662, %v663, %v654
    %v665 = vsel %vm658, %v661, %v664
    %v666 = vsel %vm655, nan, %v665
    %669 = vrot.lane.b32.xlu0 %v511, 16
    %v670 = vpop.permute.xlu0 %669
    %671 = vrot.lane.b32.xlu0 %v666, 16
    %v672 = vpop.permute.xlu0 %671
    %vm675 = vcmask 130048
    %v676 = vsel %vm675, %v202, %v670
    %v677 = vsel %vm675, %v356, %v672
    %vm678 = vcmask 261120
    %679 = vst.msk [vmem:[#allocation2] sm:$0xff] %vm678, %v676
    %680 = vst.msk [vmem:[#allocation2 + $0x8] sm:$0xff] %vm678, %v677
    // Predicated region
    $region10: #{tpu_custom_call.1} parent=1 // pred_check
      _
    $region11: #{tpu_custom_call.1} parent=1 // pred_check_branch
      %682 = sbr.rel (0) target = $region13
    $region12: #{tpu_custom_call.1} parent=1 // pred_region
      %684 = vsyncadd [#allocation3], 0
      %s685 = sshll.u32 [#allocation2], 4
      %s686 = int_to_ptr.vmem [resolvable:$true] %s685
      %s687 = sshll.u32 %s2, 4
      %s688 = int_to_ptr.hbm [resolvable:$true] %s687
      %693 = dma.vmem_to_hbm [thread:$0]  %s686, 256, %s688, [#allocation3], 128, 128, 8
    $region13: #{tpu_custom_call.1} parent=1 // pred_fallthru
      _
    // Predicated region
    $region14: #{tpu_custom_call.1} parent=1 // pred_check
      _
    $region15: #{tpu_custom_call.1} parent=1 // pred_check_branch
      %695 = sbr.rel (0) target = $region17
    $region16: #{tpu_custom_call.1} parent=1 // pred_region
      %697 = dma.done [#allocation3], 256
    $region17: #{tpu_custom_call.1} parent=1 // pred_fallthru
      _
    %698 = vsyncpa [#allocation3], 1

</llo_original>
